<compile_context>
chip_gen: v7x
topology: tpu7x:2x2x1
jax: 0.10.0
libtpu: 0.0.40
codegen_flags: <defaults>
</compile_context>

<pallas_src>
import jax
import jax.numpy as jnp
from jax.experimental import pallas as pl
from jax.experimental.pallas import tpu as pltpu

NUM_INPUT = 8
N_OUT = 3
N_HIDDEN = 32

_S = 16            # samples packed per 128-lane input row (16 * 8 = 128 lanes)
_OUT_PAD = 4       # per-sample outputs padded 3 -> 4 (16 * 4 = 64 lanes per output row)
_NEG_PAD = -1e9    # bias of the pad output column -> exp() underflows to exactly 0


def _round_up(n, m):
    return ((n + m - 1) // m) * m


def sinenet_kernel(x_ref, w1_ref, b1_ref, w2_ref, b2_ref, g_ref, o_ref):
    # x_ref : (TBP, 128)   bf16  16 samples / row, 8 features each
    # w1_ref: (128, 16*H)  bf16  block-diagonal copies of fc1.weight.T
    # b1_ref: (1, 16*H)    f32
    # w2_ref: (16*H, 64)   f32   block-diagonal copies of zero-padded fc2.weight.T
    # b2_ref: (1, 64)      f32   pad lanes hold _NEG_PAD
    # g_ref : (64, 64)     f32   group matrix: broadcasts each 4-lane group's sum
    # o_ref : (TBP, 64)    f32   16 samples / row, (3 probs + 1 zero pad) each

    # fc1 (bf16 MXU matmul, f32 accumulation) + tanh
    h = jnp.dot(x_ref[...], w1_ref[...], preferred_element_type=jnp.float32)
    h = jnp.tanh(h + b1_ref[...])

    # fc2 (pad column has zero weights and a very negative bias)
    logits = jnp.dot(h, w2_ref[...], preferred_element_type=jnp.float32) + b2_ref[...]

    # Softmax per 4-lane group.  Subtracting the row-wide max is a constant within
    # every group, so each group's softmax is unchanged while overflow is prevented.
    m = jnp.max(logits, axis=-1, keepdims=True)
    e = jnp.exp(logits - m)                                   # pad lanes -> exactly 0
    denom = jnp.dot(e, g_ref[...], preferred_element_type=jnp.float32)
    o_ref[...] = e * pl.reciprocal(denom, approx=True)


def sinenet_forward(x, w1, b1, w2, b2, *, block_rows=1024):
    """x: (B, 8) f32; w1: (H, 8); b1: (H,); w2: (3, H); b2: (3,). Returns (B, 3) f32."""
    B, nin = x.shape
    assert nin == NUM_INPUT
    H = w1.shape[0]

    # Tile size in samples: multiple of 256 so the packed bf16 input tile (TB/16, 128)
    # and the f32 output tile (TB/16, 64) satisfy the (16,128)/(8,128) tiling rules.
    tb = max(256, _round_up(min(block_rows, _round_up(B, 256)), 256))
    bp = _round_up(B, tb)
    grid = (bp // tb,)
    tbp = tb // _S                                # packed rows per block

    n_lanes_h = _S * H                            # 512 for H=32
    n_lanes_o = _S * _OUT_PAD                     # 64

    # ---- wrapper-side packing (layout plumbing, outside the kernel) ----
    x_pad = jnp.pad(x, ((0, bp - B), (0, 0)))
    x_packed = x_pad.reshape(bp // _S, _S * NUM_INPUT).astype(jnp.bfloat16)

    eye_s = jnp.eye(_S, dtype=jnp.float32)
    w1_big = jnp.kron(eye_s, w1.T.astype(jnp.float32)).astype(jnp.bfloat16)   # (128, 16H)
    b1_big = jnp.tile(b1.astype(jnp.float32), _S).reshape(1, n_lanes_h)

    w2_pad = jnp.concatenate(
        [w2.astype(jnp.float32), jnp.zeros((_OUT_PAD - N_OUT, H), jnp.float32)], axis=0)
    w2_big = jnp.kron(eye_s, w2_pad.T)                                        # (16H, 64)
    b2_pad = jnp.concatenate(
        [b2.astype(jnp.float32), jnp.full((_OUT_PAD - N_OUT,), _NEG_PAD, jnp.float32)])
    b2_big = jnp.tile(b2_pad, _S).reshape(1, n_lanes_o)

    grp = jnp.arange(n_lanes_o) // _OUT_PAD
    g = (grp[:, None] == grp[None, :]).astype(jnp.float32)                    # (64, 64)

    out_packed = pl.pallas_call(
        sinenet_kernel,
        out_shape=jax.ShapeDtypeStruct((bp // _S, n_lanes_o), jnp.float32),
        grid_spec=pltpu.PrefetchScalarGridSpec(
            num_scalar_prefetch=0,
            grid=grid,
            in_specs=[
                pl.BlockSpec((tbp, _S * NUM_INPUT), lambda i: (i, 0)),        # x (pipelined)
                pl.BlockSpec((_S * NUM_INPUT, n_lanes_h), lambda i: (0, 0)),  # W1 (resident)
                pl.BlockSpec((1, n_lanes_h), lambda i: (0, 0)),               # b1
                pl.BlockSpec((n_lanes_h, n_lanes_o), lambda i: (0, 0)),       # W2
                pl.BlockSpec((1, n_lanes_o), lambda i: (0, 0)),               # b2
                pl.BlockSpec((n_lanes_o, n_lanes_o), lambda i: (0, 0)),       # group matrix
            ],
            out_specs=pl.BlockSpec((tbp, n_lanes_o), lambda i: (i, 0)),
        ),
        compiler_params=pltpu.CompilerParams(
            dimension_semantics=("parallel",),
        ),
    )(x_packed, w1_big, b1_big, w2_big, b2_big, g)

    # unpack: (bp/16, 64) -> (bp, 4) -> (B, 3)
    return out_packed.reshape(bp, _OUT_PAD)[:B, :N_OUT]


def init_params(key, n_hidden):
    # Deterministic init mimicking torch.nn.Linear default: U(-1/sqrt(fan_in), 1/sqrt(fan_in))
    k1, k2, k3, k4 = jax.random.split(key, 4)
    bound1 = 1.0 / (NUM_INPUT ** 0.5)
    bound2 = 1.0 / (n_hidden ** 0.5)
    w1 = jax.random.uniform(k1, (n_hidden, NUM_INPUT), jnp.float32, -bound1, bound1)
    b1 = jax.random.uniform(k2, (n_hidden,), jnp.float32, -bound1, bound1)
    w2 = jax.random.uniform(k3, (N_OUT, n_hidden), jnp.float32, -bound2, bound2)
    b2 = jax.random.uniform(k4, (N_OUT,), jnp.float32, -bound2, bound2)
    return w1, b1, w2, b2


if __name__ == "__main__":
    key = jax.random.PRNGKey(0)
    kx, kp = jax.random.split(key)

    B = 512                      # small demo batch; block_rows=256 -> 2 pipelined grid steps
    x = jax.random.normal(kx, (B, NUM_INPUT), jnp.float32)
    w1, b1, w2, b2 = init_params(kp, N_HIDDEN)

    out = sinenet_forward(x, w1, b1, w2, b2, block_rows=256)
    out = jax.block_until_ready(out)

    # Reference in plain JAX (with the same bf16 rounding of x / W1 as the kernel path).
    xb = x.astype(jnp.bfloat16).astype(jnp.float32)
    w1b = w1.astype(jnp.bfloat16).astype(jnp.float32)
    ref_h = jnp.tanh(xb @ w1b.T + b1)
    ref = jax.nn.softmax(ref_h @ w2.T + b2, axis=-1)

    assert out.shape == (B, N_OUT)
    assert jnp.allclose(out, ref, atol=5e-3, rtol=0.0)
    assert jnp.allclose(jnp.sum(out, axis=-1), 1.0, atol=5e-3)

    print("KERNEL_OK")
</pallas_src>

<mosaic_0001>
module attributes {stable_mosaic.version = 11 : i64} {
  func.func @sinenet_kernel(%arg0: i32, %arg1: memref<16x128xbf16, #tpu.memory_space<vmem>>, %arg2: memref<128x512xbf16, #tpu.memory_space<vmem>>, %arg3: memref<1x512xf32, #tpu.memory_space<vmem>>, %arg4: memref<512x64xf32, #tpu.memory_space<vmem>>, %arg5: memref<1x64xf32, #tpu.memory_space<vmem>>, %arg6: memref<64x64xf32, #tpu.memory_space<vmem>>, %arg7: memref<16x64xf32, #tpu.memory_space<vmem>>) attributes {dimension_semantics = [#tpu.dimension_semantics<parallel>], iteration_bounds = array<i64: 2>, scalar_prefetch = 0 : i64, scratch_operands = 0 : i64, tpu.core_type = #tpu.core_type<tc>, window_params = [{transform_indices = @transform_0, window_bounds = array<i64: 16, 128>}, {pipeline_mode = #tpu.pipeline_mode<synchronous>, transform_indices = @transform_1, window_bounds = array<i64: 128, 512>}, {pipeline_mode = #tpu.pipeline_mode<synchronous>, transform_indices = @transform_2, window_bounds = array<i64: 1, 512>}, {pipeline_mode = #tpu.pipeline_mode<synchronous>, transform_indices = @transform_3, window_bounds = array<i64: 512, 64>}, {pipeline_mode = #tpu.pipeline_mode<synchronous>, transform_indices = @transform_4, window_bounds = array<i64: 1, 64>}, {pipeline_mode = #tpu.pipeline_mode<synchronous>, transform_indices = @transform_5, window_bounds = array<i64: 64, 64>}, {transform_indices = @transform_6, window_bounds = array<i64: 16, 64>}]} {
    %c0 = arith.constant 0 : index
    %c0_0 = arith.constant 0 : index
    %0 = vector.load %arg1[%c0, %c0_0] : memref<16x128xbf16, #tpu.memory_space<vmem>>, vector<16x128xbf16>
    %c0_1 = arith.constant 0 : index
    %c0_2 = arith.constant 0 : index
    %1 = vector.load %arg2[%c0_1, %c0_2] : memref<128x512xbf16, #tpu.memory_space<vmem>>, vector<128x512xbf16>
    %cst = arith.constant dense<0.000000e+00> : vector<16x512xf32>
    %2 = tpu.matmul %0, %1, %cst {dimension_numbers = #tpu.dot_dimension_numbers<[1], [0], [0], [1], [0, 0, 1, 1], [], []>} : vector<16x128xbf16>, vector<128x512xbf16>, vector<16x512xf32> -> vector<16x512xf32>
    %c0_3 = arith.constant 0 : index
    %c0_4 = arith.constant 0 : index
    %3 = vector.load %arg3[%c0_3, %c0_4] : memref<1x512xf32, #tpu.memory_space<vmem>>, vector<1x512xf32>
    %4 = vector.broadcast %3 : vector<1x512xf32> to vector<16x512xf32>
    %5 = arith.addf %2, %4 : vector<16x512xf32>
    %6 = math.tanh %5 : vector<16x512xf32>
    %c0_5 = arith.constant 0 : index
    %c0_6 = arith.constant 0 : index
    %7 = vector.load %arg4[%c0_5, %c0_6] : memref<512x64xf32, #tpu.memory_space<vmem>>, vector<512x64xf32>
    %cst_7 = arith.constant dense<0.000000e+00> : vector<16x64xf32>
    %8 = tpu.matmul %6, %7, %cst_7 {dimension_numbers = #tpu.dot_dimension_numbers<[1], [0], [0], [1], [0, 0, 1, 1], [], []>} : vector<16x512xf32>, vector<512x64xf32>, vector<16x64xf32> -> vector<16x64xf32>
    %c0_8 = arith.constant 0 : index
    %c0_9 = arith.constant 0 : index
    %9 = vector.load %arg5[%c0_8, %c0_9] : memref<1x64xf32, #tpu.memory_space<vmem>>, vector<1x64xf32>
    %10 = vector.broadcast %9 : vector<1x64xf32> to vector<16x64xf32>
    %11 = arith.addf %8, %10 : vector<16x64xf32>
    %cst_10 = arith.constant dense<0xFF800000> : vector<16xf32>
    %12 = vector.multi_reduction <maximumf>, %11, %cst_10 [1] : vector<16x64xf32> to vector<16xf32>
    %13 = vector.shape_cast %12 : vector<16xf32> to vector<16x1xf32>
    %14 = vector.broadcast %13 : vector<16x1xf32> to vector<16x64xf32>
    %15 = arith.subf %11, %14 : vector<16x64xf32>
    %16 = math.exp %15 : vector<16x64xf32>
    %c0_11 = arith.constant 0 : index
    %c0_12 = arith.constant 0 : index
    %17 = vector.load %arg6[%c0_11, %c0_12] : memref<64x64xf32, #tpu.memory_space<vmem>>, vector<64x64xf32>
    %cst_13 = arith.constant dense<0.000000e+00> : vector<16x64xf32>
    %18 = tpu.matmul %16, %17, %cst_13 {dimension_numbers = #tpu.dot_dimension_numbers<[1], [0], [0], [1], [0, 0, 1, 1], [], []>} : vector<16x64xf32>, vector<64x64xf32>, vector<16x64xf32> -> vector<16x64xf32>
    %19 = tpu.reciprocal %18 {approx = true} : vector<16x64xf32> -> vector<16x64xf32>
    %20 = arith.mulf %16, %19 : vector<16x64xf32>
    %c0_14 = arith.constant 0 : index
    %c0_15 = arith.constant 0 : index
    %21 = vector.load %arg7[%c0_14, %c0_15] : memref<16x64xf32, #tpu.memory_space<vmem>>, vector<16x64xf32>
    tpu.vector_store %arg7[%c0_14, %c0_15], %20 {strides = array<i32>} : memref<16x64xf32, #tpu.memory_space<vmem>>, vector<16x64xf32>,
    return
  }
  func.func @transform_0(%arg0: i32) -> (i32, i32) {
    %c0_i32 = arith.constant 0 : i32
    %c0_i32_0 = arith.constant 0 : i32
    return %arg0, %c0_i32 : i32, i32
  }
  func.func @transform_1(%arg0: i32) -> (i32, i32) {
    %c0_i32 = arith.constant 0 : i32
    %c0_i32_0 = arith.constant 0 : i32
    %c0_i32_1 = arith.constant 0 : i32
    return %c0_i32, %c0_i32_0 : i32, i32
  }
  func.func @transform_2(%arg0: i32) -> (i32, i32) {
    %c0_i32 = arith.constant 0 : i32
    %c0_i32_0 = arith.constant 0 : i32
    %c0_i32_1 = arith.constant 0 : i32
    return %c0_i32, %c0_i32_0 : i32, i32
  }
  func.func @transform_3(%arg0: i32) -> (i32, i32) {
    %c0_i32 = arith.constant 0 : i32
    %c0_i32_0 = arith.constant 0 : i32
    %c0_i32_1 = arith.constant 0 : i32
    return %c0_i32, %c0_i32_0 : i32, i32
  }
  func.func @transform_4(%arg0: i32) -> (i32, i32) {
    %c0_i32 = arith.constant 0 : i32
    %c0_i32_0 = arith.constant 0 : i32
    %c0_i32_1 = arith.constant 0 : i32
    return %c0_i32, %c0_i32_0 : i32, i32
  }
  func.func @transform_5(%arg0: i32) -> (i32, i32) {
    %c0_i32 = arith.constant 0 : i32
    %c0_i32_0 = arith.constant 0 : i32
    %c0_i32_1 = arith.constant 0 : i32
    return %c0_i32, %c0_i32_0 : i32, i32
  }
  func.func @transform_6(%arg0: i32) -> (i32, i32) {
    %c0_i32 = arith.constant 0 : i32
    %c0_i32_0 = arith.constant 0 : i32
    return %arg0, %c0_i32 : i32, i32
  }
}

</mosaic_0001>

<llo_original>
// kernel: tpu_custom_call.1
$region0: #{tpu_custom_call.1}
  #allocation0 [shape = 'u32[]', space=smem, size = 0x4, offset = 0x4, fixed_abs, tag = 'smem constant byte address 0x4 - core index']
  #allocation1 [shape = 'u32[144,128]{1,0:T(1,128)}', space=vmem, size = 0x12000, scoped, tag = 'internal scratch']
  %s0 = inlined_call_operand.vmem [shape: bf16[32,128], index: 0, kind: input, shape index: {}]
  %s1 = inlined_call_operand.vmem [shape: bf16[128,512], index: 1, kind: input, shape index: {}]
  %s2 = inlined_call_operand.vmem [shape: f32[1,512], index: 2, kind: input, shape index: {}]
  %s3 = inlined_call_operand.vmem [shape: f32[512,64], index: 3, kind: input, shape index: {}]
  %s4 = inlined_call_operand.vmem [shape: f32[1,64], index: 4, kind: input, shape index: {}]
  %s5 = inlined_call_operand.vmem [shape: f32[64,64], index: 5, kind: input, shape index: {}]
  %s6 = inlined_call_operand.hbm [shape: f32[32,64], index: 6, kind: output, shape index: {}]
  %s7 = sld [smem:[#allocation0]]
  $region57: #{tpu_custom_call.1} parent=0
    _
  %s9 = ssub.s32 1, %s7
  %s10 = scalar_select 0, %s9, %s7
  $region1: #{tpu_custom_call.1} parent=0
    #allocation2 [shape = 'u8[16384]{0}', space=vmem, size = 0x4000, scoped, tag = 'output window, operand 0']
    #allocation3 [shape = 's32[2]{0}', space=sflag, size = 0x8, scoped, tag = 'scoped memory for tpu_custom_call.1']
    %11 = vsyncpa [#allocation3], 0
    %s12 = scalar_lea.sflag [#allocation3], 1
    %13 = vsyncpa %s12, 0
    loop: start=0, step=1, limit=4
    $region2: #{tpu_custom_call.1} parent=1 // loop_pre_header
      _
    $region3: #{tpu_custom_call.1} parent=1 // loop_header
      %s15 = sphi 0, %s19
      %p16 = scmp.ge.s32.totalorder %s15, 4
      %s25 = sphi 0, %s27
      %s28 = sphi 0, %s25
      %s29 = sphi 0, %s28
      %s45 = sphi 0, %s29
      %s49 = sphi 0, %s49
      %s51 = sphi 0, %s49
      %s52 = sphi 0, %s51
      %s66 = sphi 0, %s52
      %s70 = sphi 0, %s70
      %s72 = sphi 0, %s70
      %s73 = sphi 0, %s72
      %s87 = sphi 0, %s73
      %s91 = sphi 0, %s91
      %s93 = sphi 0, %s91
      %s94 = sphi 0, %s93
      %s108 = sphi 0, %s94
      %s112 = sphi 0, %s112
      %s114 = sphi 0, %s112
      %s115 = sphi 0, %s114
      %s129 = sphi 0, %s115
      %s133 = sphi 0, %s133
      %s135 = sphi 0, %s133
      %s136 = sphi 0, %s135
      %s150 = sphi 0, %s136
      %s156 = sphi 0, %s158
      %s159 = sphi 0, %s156
      %s160 = sphi 0, %s159
      %s176 = sphi 0, %s160
    $region4: #{tpu_custom_call.1} parent=1 // loop_header_branch
      %18 = sbr.rel (%p16) target = $region8
    $region5: #{tpu_custom_call.1} parent=1 // loop_body
      %s20 = ssub.s32 %s15, 1
      %s21 = ssub.s32 %s15, 2
      %s22 = sadd.s32 %s15, 1
      %s23 = ssub.s32 %s15, %s22
      %p24 = scmp.eq.s32.totalorder %s23, 0
      %s26 = sadd.s32 %s25, 1
      %s27 = scalar_select %p24, %s25, %s26
      %p30 = pneg %p24
      %p31 = scmp.eq.s32.totalorder %s15, 1
      %p32 = por %p30, %p31
      %p33 = scmp.ne.s32.totalorder %s25, %s28
      %p34 = scmp.eq.s32.totalorder %s15, 0
      %p35 = por %p33, %p34
      %p36 = scmp.ne.s32.totalorder %s25, %s28
      %p37 = scmp.eq.s32.totalorder %s20, 1
      %p38 = por %p36, %p37
      %p39 = scmp.ne.s32.totalorder %s28, %s29
      %p40 = scmp.eq.s32.totalorder %s20, 0
      %p41 = por %p39, %p40
      %p42 = scmp.ne.s32.totalorder %s28, %s29
      %p43 = scmp.eq.s32.totalorder %s21, 1
      %p44 = por %p42, %p43
      %p46 = scmp.ne.s32.totalorder %s29, %s45
      %p47 = scmp.eq.s32.totalorder %s21, 0
      %p48 = por %p46, %p47
      %s50 = sadd.s32 %s49, 1
      %p53 = scmp.eq.s32.totalorder %s15, 1
      %p54 = scmp.ne.s32.totalorder %s49, %s51
      %p55 = scmp.eq.s32.totalorder %s15, 0
      %p56 = por %p54, %p55
      %p57 = scmp.ne.s32.totalorder %s49, %s51
      %p58 = scmp.eq.s32.totalorder %s20, 1
      %p59 = por %p57, %p58
      %p60 = scmp.ne.s32.totalorder %s51, %s52
      %p61 = scmp.eq.s32.totalorder %s20, 0
      %p62 = por %p60, %p61
      %p63 = scmp.ne.s32.totalorder %s51, %s52
      %p64 = scmp.eq.s32.totalorder %s21, 1
      %p65 = por %p63, %p64
      %p67 = scmp.ne.s32.totalorder %s52, %s66
      %p68 = scmp.eq.s32.totalorder %s21, 0
      %p69 = por %p67, %p68
      %s71 = sadd.s32 %s70, 1
      %p74 = scmp.eq.s32.totalorder %s15, 1
      %p75 = scmp.ne.s32.totalorder %s70, %s72
      %p76 = scmp.eq.s32.totalorder %s15, 0
      %p77 = por %p75, %p76
      %p78 = scmp.ne.s32.totalorder %s70, %s72
      %p79 = scmp.eq.s32.totalorder %s20, 1
      %p80 = por %p78, %p79
      %p81 = scmp.ne.s32.totalorder %s72, %s73
      %p82 = scmp.eq.s32.totalorder %s20, 0
      %p83 = por %p81, %p82
      %p84 = scmp.ne.s32.totalorder %s72, %s73
      %p85 = scmp.eq.s32.totalorder %s21, 1
      %p86 = por %p84, %p85
      %p88 = scmp.ne.s32.totalorder %s73, %s87
      %p89 = scmp.eq.s32.totalorder %s21, 0
      %p90 = por %p88, %p89
      %s92 = sadd.s32 %s91, 1
      %p95 = scmp.eq.s32.totalorder %s15, 1
      %p96 = scmp.ne.s32.totalorder %s91, %s93
      %p97 = scmp.eq.s32.totalorder %s15, 0
      %p98 = por %p96, %p97
      %p99 = scmp.ne.s32.totalorder %s91, %s93
      %p100 = scmp.eq.s32.totalorder %s20, 1
      %p101 = por %p99, %p100
      %p102 = scmp.ne.s32.totalorder %s93, %s94
      %p103 = scmp.eq.s32.totalorder %s20, 0
      %p104 = por %p102, %p103
      %p105 = scmp.ne.s32.totalorder %s93, %s94
      %p106 = scmp.eq.s32.totalorder %s21, 1
      %p107 = por %p105, %p106
      %p109 = scmp.ne.s32.totalorder %s94, %s108
      %p110 = scmp.eq.s32.totalorder %s21, 0
      %p111 = por %p109, %p110
      %s113 = sadd.s32 %s112, 1
      %p116 = scmp.eq.s32.totalorder %s15, 1
      %p117 = scmp.ne.s32.totalorder %s112, %s114
      %p118 = scmp.eq.s32.totalorder %s15, 0
      %p119 = por %p117, %p118
      %p120 = scmp.ne.s32.totalorder %s112, %s114
      %p121 = scmp.eq.s32.totalorder %s20, 1
      %p122 = por %p120, %p121
      %p123 = scmp.ne.s32.totalorder %s114, %s115
      %p124 = scmp.eq.s32.totalorder %s20, 0
      %p125 = por %p123, %p124
      %p126 = scmp.ne.s32.totalorder %s114, %s115
      %p127 = scmp.eq.s32.totalorder %s21, 1
      %p128 = por %p126, %p127
      %p130 = scmp.ne.s32.totalorder %s115, %s129
      %p131 = scmp.eq.s32.totalorder %s21, 0
      %p132 = por %p130, %p131
      %s134 = sadd.s32 %s133, 1
      %p137 = scmp.eq.s32.totalorder %s15, 1
      %p138 = scmp.ne.s32.totalorder %s133, %s135
      %p139 = scmp.eq.s32.totalorder %s15, 0
      %p140 = por %p138, %p139
      %p141 = scmp.ne.s32.totalorder %s133, %s135
      %p142 = scmp.eq.s32.totalorder %s20, 1
      %p143 = por %p141, %p142
      %p144 = scmp.ne.s32.totalorder %s135, %s136
      %p145 = scmp.eq.s32.totalorder %s20, 0
      %p146 = por %p144, %p145
      %p147 = scmp.ne.s32.totalorder %s135, %s136
      %p148 = scmp.eq.s32.totalorder %s21, 1
      %p149 = por %p147, %p148
      %p151 = scmp.ne.s32.totalorder %s136, %s150
      %p152 = scmp.eq.s32.totalorder %s21, 0
      %p153 = por %p151, %p152
      %s154 = ssub.s32 %s15, %s22
      %p155 = scmp.eq.s32.totalorder %s154, 0
      %s157 = sadd.s32 %s156, 1
      %s158 = scalar_select %p155, %s156, %s157
      %p161 = pneg %p155
      %p162 = scmp.eq.s32.totalorder %s15, 1
      %p163 = por %p161, %p162
      %p164 = scmp.ne.s32.totalorder %s156, %s159
      %p165 = scmp.eq.s32.totalorder %s15, 0
      %p166 = por %p164, %p165
      %p167 = scmp.ne.s32.totalorder %s156, %s159
      %p168 = scmp.eq.s32.totalorder %s20, 1
      %p169 = por %p167, %p168
      %p170 = scmp.ne.s32.totalorder %s159, %s160
      %p171 = scmp.eq.s32.totalorder %s20, 0
      %p172 = por %p170, %p171
      %p173 = scmp.ne.s32.totalorder %s159, %s160
      %p174 = scmp.eq.s32.totalorder %s21, 1
      %p175 = por %p173, %p174
      %p177 = scmp.ne.s32.totalorder %s160, %s176
      %p178 = scmp.eq.s32.totalorder %s21, 0
      %p179 = por %p177, %p178
      %p180 = scmp.le.s32.totalorder 1, %s15
      %p181 = scmp.lt.s32.totalorder %s15, 3
      %p182 = pnand %p180, %p181
      %p183 = pneg %p182
      // Predicated region
      $region9: #{tpu_custom_call.1} parent=5 // pred_check
        _
      $region10: #{tpu_custom_call.1} parent=5 // pred_check_branch
        %185 = sbr.rel (%p182) target = $region12
      $region11: #{tpu_custom_call.1} parent=5 // pred_region
        %s186 = ssub.s32 %s15, 1
        // Predicated region
        $region13: #{tpu_custom_call.1} parent=11 // pred_check
          %p187 = pneg %p62
        $region14: #{tpu_custom_call.1} parent=11 // pred_check_branch
          %189 = sbr.rel (%p187) target = $region16
        $region15: #{tpu_custom_call.1} parent=11 // pred_region
          _
        $region16: #{tpu_custom_call.1} parent=11 // pred_fallthru
          _
        // Predicated region
        $region17: #{tpu_custom_call.1} parent=11 // pred_check
          %p190 = pneg %p83
        $region18: #{tpu_custom_call.1} parent=11 // pred_check_branch
          %192 = sbr.rel (%p190) target = $region20
        $region19: #{tpu_custom_call.1} parent=11 // pred_region
          _
        $region20: #{tpu_custom_call.1} parent=11 // pred_fallthru
          _
        // Predicated region
        $region21: #{tpu_custom_call.1} parent=11 // pred_check
          %p193 = pneg %p104
        $region22: #{tpu_custom_call.1} parent=11 // pred_check_branch
          %195 = sbr.rel (%p193) target = $region24
        $region23: #{tpu_custom_call.1} parent=11 // pred_region
          _
        $region24: #{tpu_custom_call.1} parent=11 // pred_fallthru
          _
        // Predicated region
        $region25: #{tpu_custom_call.1} parent=11 // pred_check
          %p196 = pneg %p125
        $region26: #{tpu_custom_call.1} parent=11 // pred_check_branch
          %198 = sbr.rel (%p196) target = $region28
        $region27: #{tpu_custom_call.1} parent=11 // pred_region
          _
        $region28: #{tpu_custom_call.1} parent=11 // pred_fallthru
          _
        // Predicated region
        $region29: #{tpu_custom_call.1} parent=11 // pred_check
          %p199 = pneg %p146
        $region30: #{tpu_custom_call.1} parent=11 // pred_check_branch
          %201 = sbr.rel (%p199) target = $region32
        $region31: #{tpu_custom_call.1} parent=11 // pred_region
          _
        $region32: #{tpu_custom_call.1} parent=11 // pred_fallthru
          _
      $region12: #{tpu_custom_call.1} parent=5 // pred_fallthru
        _
      %p202 = scmp.lt.s32.totalorder %s15, 2
      // Predicated region
      $region33: #{tpu_custom_call.1} parent=5 // pred_check
        %p203 = pneg %p202
      $region34: #{tpu_custom_call.1} parent=5 // pred_check_branch
        %205 = sbr.rel (%p203) target = $region36
      $region35: #{tpu_custom_call.1} parent=5 // pred_region
        // Predicated region
        $region37: #{tpu_custom_call.1} parent=35 // pred_check
          %p206 = pneg %p35
        $region38: #{tpu_custom_call.1} parent=35 // pred_check_branch
          %208 = sbr.rel (%p206) target = $region40
        $region39: #{tpu_custom_call.1} parent=35 // pred_region
          %s209 = smul.u32 2, %s15
          %p210 = scmp.lt.s32.totalorder %s209, 3
          %s211 = scalar_select %p210, %s209, 3
          %s212 = smul.addr %s211, 4
          %s213 = scalar_lea.vmem %s0, %s212
          %s214 = smul.u32 2, %s15
        $region40: #{tpu_custom_call.1} parent=35 // pred_fallthru
          _
      $region36: #{tpu_custom_call.1} parent=5 // pred_fallthru
        _
      %p215 = scmp.le.s32.totalorder 1, %s15
      %p216 = scmp.lt.s32.totalorder %s15, 3
      %p217 = pnand %p215, %p216
      %p218 = pneg %p217
      // Predicated region
      $region41: #{tpu_custom_call.1} parent=5 // pred_check
        _
      $region42: #{tpu_custom_call.1} parent=5 // pred_check_branch
        %220 = sbr.rel (%p217) target = $region44
      $region43: #{tpu_custom_call.1} parent=5 // pred_region
        %s221 = ssub.s32 %s15, 1
        %s222 = smul.u32 2, %s20
        %p223 = scmp.lt.s32.totalorder %s222, 3
        %s224 = scalar_select %p223, %s222, 3
        %s225 = smul.addr %s224, 4
        %s226 = scalar_lea.vmem %s0, %s225
        %p227 = pneg %p41
        %p228 = pneg %p38
        %p229 = pneg %p62
        %p230 = pneg %p59
        %p231 = pneg %p83
        %p232 = pneg %p80
        %p233 = pneg %p104
        %p234 = pneg %p101
        %p235 = pneg %p125
        %p236 = pneg %p122
        %p237 = pneg %p146
        %p238 = pneg %p143
        %p239 = pneg %p172
        %p240 = pneg %p169
        %s241 = sand.u32 %s159, 1
        %s242 = scalar_lea.sflag [#allocation3], %s241
        %s243 = sand.u32 %s159, 1
        %s244 = smul.addr %s243, 16
        %s245 = scalar_lea.vmem [#allocation2], %s244
        %s246 = smul.u32 2, %s20
        %p247 = scmp.lt.s32.totalorder %s246, 3
        %s248 = scalar_select %p247, %s246, 3
        %s249 = smul.addr %s248, 4
        %s250 = scalar_lea.vmem %s0, %s249
        %s251 = smul.u32 2, %s20
        %s252 = smul.u32 2, %s20
        %v254 = vld [vmem:[%s250] sm:$0xf]
        %v255 = vld [vmem:[%s250 + $0x4] sm:$0xf]
        %v256 = vld [vmem:[%s1] sm:$0xff]
        %v257 = vld [vmem:[%s1 + $0x8] sm:$0xff]
        %v258 = vld [vmem:[%s1 + $0x10] sm:$0xff]
        %v259 = vld [vmem:[%s1 + $0x18] sm:$0xff]
        %v260 = vld [vmem:[%s1 + $0x20] sm:$0xff]
        %v261 = vld [vmem:[%s1 + $0x28] sm:$0xff]
        %v262 = vld [vmem:[%s1 + $0x30] sm:$0xff]
        %v263 = vld [vmem:[%s1 + $0x38] sm:$0xff]
        %v264 = vld [vmem:[%s1 + $0x40] sm:$0xff]
        %v265 = vld [vmem:[%s1 + $0x48] sm:$0xff]
        %v266 = vld [vmem:[%s1 + $0x50] sm:$0xff]
        %v267 = vld [vmem:[%s1 + $0x58] sm:$0xff]
        %v268 = vld [vmem:[%s1 + $0x60] sm:$0xff]
        %v269 = vld [vmem:[%s1 + $0x68] sm:$0xff]
        %v270 = vld [vmem:[%s1 + $0x70] sm:$0xff]
        %v271 = vld [vmem:[%s1 + $0x78] sm:$0xff]
        %v272 = vld [vmem:[%s1 + $0x80] sm:$0xff]
        %v273 = vld [vmem:[%s1 + $0x88] sm:$0xff]
        %v274 = vld [vmem:[%s1 + $0x90] sm:$0xff]
        %v275 = vld [vmem:[%s1 + $0x98] sm:$0xff]
        %v276 = vld [vmem:[%s1 + $0xa0] sm:$0xff]
        %v277 = vld [vmem:[%s1 + $0xa8] sm:$0xff]
        %v278 = vld [vmem:[%s1 + $0xb0] sm:$0xff]
        %v279 = vld [vmem:[%s1 + $0xb8] sm:$0xff]
        %v280 = vld [vmem:[%s1 + $0xc0] sm:$0xff]
        %v281 = vld [vmem:[%s1 + $0xc8] sm:$0xff]
        %v282 = vld [vmem:[%s1 + $0xd0] sm:$0xff]
        %v283 = vld [vmem:[%s1 + $0xd8] sm:$0xff]
        %v284 = vld [vmem:[%s1 + $0xe0] sm:$0xff]
        %v285 = vld [vmem:[%s1 + $0xe8] sm:$0xff]
        %v286 = vld [vmem:[%s1 + $0xf0] sm:$0xff]
        %v287 = vld [vmem:[%s1 + $0xf8] sm:$0xff]
        %v288 = vld [vmem:[%s2] sm:$0xf]
        %v290 = vlaneseq
        %v291 = vshrl.u32 %v290, 7
        %v292 = vsub.s32 0, %v291
        %v293 = vrot.slane %v288, %v292
        %v294 = vlaneseq
        %v295 = vshrl.u32 %v294, 7
        %v296 = vsub.s32 1, %v295
        %v297 = vrot.slane %v288, %v296
        %v298 = vlaneseq
        %v299 = vshrl.u32 %v298, 7
        %v300 = vsub.s32 2, %v299
        %v301 = vrot.slane %v288, %v300
        %v302 = vlaneseq
        %v303 = vshrl.u32 %v302, 7
        %v304 = vsub.s32 3, %v303
        %v305 = vrot.slane %v288, %v304
        %v312 = vunpack.c.l.b16 %v254
        %v313 = vunpack.c.l.b16 %v255
        %v314 = vpack.c.b16 %v313, %v312
        %v348 = vunpack.c.l.b16 %v256
        %v349 = vunpack.c.h.b16 %v256
        %v350 = vunpack.c.l.b16 %v257
        %v351 = vunpack.c.h.b16 %v257
        %v352 = vunpack.c.l.b16 %v258
        %v353 = vunpack.c.h.b16 %v258
        %v354 = vunpack.c.l.b16 %v259
        %v355 = vunpack.c.h.b16 %v259
        %v356 = vunpack.c.l.b16 %v260
        %v357 = vunpack.c.h.b16 %v260
        %v358 = vunpack.c.l.b16 %v261
        %v359 = vunpack.c.h.b16 %v261
        %v360 = vunpack.c.l.b16 %v262
        %v361 = vunpack.c.h.b16 %v262
        %v362 = vunpack.c.l.b16 %v263
        %v363 = vunpack.c.h.b16 %v263
        %v364 = vunpack.c.l.b16 %v264
        %v365 = vunpack.c.h.b16 %v264
        %v366 = vunpack.c.l.b16 %v265
        %v367 = vunpack.c.h.b16 %v265
        %v368 = vunpack.c.l.b16 %v266
        %v369 = vunpack.c.h.b16 %v266
        %v370 = vunpack.c.l.b16 %v267
        %v371 = vunpack.c.h.b16 %v267
        %v372 = vunpack.c.l.b16 %v268
        %v373 = vunpack.c.h.b16 %v268
        %v374 = vunpack.c.l.b16 %v269
        %v375 = vunpack.c.h.b16 %v269
        %v376 = vunpack.c.l.b16 %v270
        %v377 = vunpack.c.h.b16 %v270
        %v378 = vunpack.c.l.b16 %v271
        %v379 = vunpack.c.h.b16 %v271
        %v380 = vunpack.c.l.b16 %v272
        %v381 = vunpack.c.h.b16 %v272
        %v382 = vunpack.c.l.b16 %v273
        %v383 = vunpack.c.h.b16 %v273
        %v384 = vunpack.c.l.b16 %v274
        %v385 = vunpack.c.h.b16 %v274
        %v386 = vunpack.c.l.b16 %v275
        %v387 = vunpack.c.h.b16 %v275
        %v388 = vunpack.c.l.b16 %v276
        %v389 = vunpack.c.h.b16 %v276
        %v390 = vunpack.c.l.b16 %v277
        %v391 = vunpack.c.h.b16 %v277
        %v392 = vunpack.c.l.b16 %v278
        %v393 = vunpack.c.h.b16 %v278
        %v394 = vunpack.c.l.b16 %v279
        %v395 = vunpack.c.h.b16 %v279
        %v396 = vunpack.c.l.b16 %v280
        %v397 = vunpack.c.h.b16 %v280
        %v398 = vunpack.c.l.b16 %v281
        %v399 = vunpack.c.h.b16 %v281
        %v400 = vunpack.c.l.b16 %v282
        %v401 = vunpack.c.h.b16 %v282
        %v402 = vunpack.c.l.b16 %v283
        %v403 = vunpack.c.h.b16 %v283
        %v404 = vunpack.c.l.b16 %v284
        %v405 = vunpack.c.h.b16 %v284
        %v406 = vunpack.c.l.b16 %v285
        %v407 = vunpack.c.h.b16 %v285
        %v408 = vunpack.c.l.b16 %v286
        %v409 = vunpack.c.h.b16 %v286
        %v410 = vunpack.c.l.b16 %v287
        %v411 = vunpack.c.h.b16 %v287
        %v412 = vpack.c.b16 %v352, %v348
        %v413 = vpack.c.b16 %v353, %v349
        %v414 = vpack.c.b16 %v354, %v350
        %v415 = vpack.c.b16 %v355, %v351
        %v416 = vpack.c.b16 %v360, %v356
        %v417 = vpack.c.b16 %v361, %v357
        %v418 = vpack.c.b16 %v362, %v358
        %v419 = vpack.c.b16 %v363, %v359
        %v420 = vpack.c.b16 %v368, %v364
        %v421 = vpack.c.b16 %v369, %v365
        %v422 = vpack.c.b16 %v370, %v366
        %v423 = vpack.c.b16 %v371, %v367
        %v424 = vpack.c.b16 %v376, %v372
        %v425 = vpack.c.b16 %v377, %v373
        %v426 = vpack.c.b16 %v378, %v374
        %v427 = vpack.c.b16 %v379, %v375
        %v428 = vpack.c.b16 %v384, %v380
        %v429 = vpack.c.b16 %v385, %v381
        %v430 = vpack.c.b16 %v386, %v382
        %v431 = vpack.c.b16 %v387, %v383
        %v432 = vpack.c.b16 %v392, %v388
        %v433 = vpack.c.b16 %v393, %v389
        %v434 = vpack.c.b16 %v394, %v390
        %v435 = vpack.c.b16 %v395, %v391
        %v436 = vpack.c.b16 %v400, %v396
        %v437 = vpack.c.b16 %v401, %v397
        %v438 = vpack.c.b16 %v402, %v398
        %v439 = vpack.c.b16 %v403, %v399
        %v440 = vpack.c.b16 %v408, %v404
        %v441 = vpack.c.b16 %v409, %v405
        %v442 = vpack.c.b16 %v410, %v406
        %v443 = vpack.c.b16 %v411, %v407
        %476 = vmatprep.subr.bf16.mxu0 %v413
        %477 = vmatpush1.bf16.msra.mxu0 %v412
        %478 = vmatprep.subr.bf16.mxu0 %v417
        %479 = vmatpush1.bf16.msra.mxu0 %v416
        %480 = vmatprep.subr.bf16.mxu0 %v421
        %481 = vmatpush1.bf16.msra.mxu0 %v420
        %482 = vmatprep.subr.bf16.mxu0 %v425
        %483 = vmatpush1.bf16.msra.mxu0 %v424
        %484 = vmatprep.subr.bf16.mxu0 %v429
        %485 = vmatpush1.bf16.msra.mxu0 %v428
        %486 = vmatprep.subr.bf16.mxu0 %v433
        %487 = vmatpush1.bf16.msra.mxu0 %v432
        %488 = vmatprep.subr.bf16.mxu0 %v437
        %489 = vmatpush1.bf16.msra.mxu0 %v436
        %490 = vmatprep.subr.bf16.mxu0 %v441
        %491 = vmatpush1.bf16.msra.mxu0 %v440
        %492 = vmatprep.subr.bf16.mxu0 0
        %493 = vmatpush1.bf16.msra.mxu0 0
        %494 = vmatprep.subr.bf16.mxu0 0
        %495 = vmatpush1.bf16.msra.mxu0 0
        %496 = vmatprep.subr.bf16.mxu0 0
        %497 = vmatpush1.bf16.msra.mxu0 0
        %498 = vmatprep.subr.bf16.mxu0 0
        %499 = vmatpush1.bf16.msra.mxu0 0
        %500 = vmatprep.subr.bf16.mxu0 0
        %501 = vmatpush1.bf16.msra.mxu0 0
        %502 = vmatprep.subr.bf16.mxu0 0
        %503 = vmatpush1.bf16.msra.mxu0 0
        %504 = vmatprep.subr.bf16.mxu0 0
        %505 = vmatpush1.bf16.msra.mxu0 0
        %506 = vmatprep.subr.bf16.mxu0 0
        %507 = vmatpush1.bf16.msra.mxu0 0
        %508 = vmatprep.mubr.bf16.mxu0 0
        %509 = vmatmul.mubr.bf16.gmra.mrb[0].mxu0 %v314
        %v510 = vpop.f32.mrb[0].mxu0
        %v511 = vadd.f32 %v293, %v510
        %v512 = vpop.f32.mrb[0].mxu0
        %v513 = vadd.f32 %v297, %v512
        %v514 = vpop.f32.mrb[0].mxu0
        %v515 = vadd.f32 %v293, %v514
        %v516 = vpop.f32.mrb[0].mxu0
        %v517 = vadd.f32 %v297, %v516
        %518 = vdwg.mxu0
        %519 = vmatprep.subr.bf16.mxu0 %v415
        %520 = vmatpush1.bf16.msra.mxu0 %v414
        %521 = vmatprep.subr.bf16.mxu0 %v419
        %522 = vmatpush1.bf16.msra.mxu0 %v418
        %523 = vmatprep.subr.bf16.mxu0 %v423
        %524 = vmatpush1.bf16.msra.mxu0 %v422
        %525 = vmatprep.subr.bf16.mxu0 %v427
        %526 = vmatpush1.bf16.msra.mxu0 %v426
        %527 = vmatprep.subr.bf16.mxu0 %v431
        %528 = vmatpush1.bf16.msra.mxu0 %v430
        %529 = vmatprep.subr.bf16.mxu0 %v435
        %530 = vmatpush1.bf16.msra.mxu0 %v434
        %531 = vmatprep.subr.bf16.mxu0 %v439
        %532 = vmatpush1.bf16.msra.mxu0 %v438
        %533 = vmatprep.subr.bf16.mxu0 %v443
        %534 = vmatpush1.bf16.msra.mxu0 %v442
        %535 = vmatprep.subr.bf16.mxu0 0
        %536 = vmatpush1.bf16.msra.mxu0 0
        %537 = vmatprep.subr.bf16.mxu0 0
        %538 = vmatpush1.bf16.msra.mxu0 0
        %539 = vmatprep.subr.bf16.mxu0 0
        %540 = vmatpush1.bf16.msra.mxu0 0
        %541 = vmatprep.subr.bf16.mxu0 0
        %542 = vmatpush1.bf16.msra.mxu0 0
        %543 = vmatprep.subr.bf16.mxu0 0
        %544 = vmatpush1.bf16.msra.mxu0 0
        %545 = vmatprep.subr.bf16.mxu0 0
        %546 = vmatpush1.bf16.msra.mxu0 0
        %547 = vmatprep.subr.bf16.mxu0 0
        %548 = vmatpush1.bf16.msra.mxu0 0
        %549 = vmatprep.subr.bf16.mxu0 0
        %550 = vmatpush1.bf16.msra.mxu0 0
        %551 = vmatprep.mubr.bf16.mxu0 0
        %552 = vmatmul.mubr.bf16.gmra.mrb[0].mxu0 %v314
        %v553 = vpop.f32.mrb[0].mxu0
        %v554 = vadd.f32 %v301, %v553
        %v555 = vpop.f32.mrb[0].mxu0
        %v556 = vadd.f32 %v305, %v555
        %v557 = vpop.f32.mrb[0].mxu0
        %v558 = vadd.f32 %v301, %v557
        %v559 = vpop.f32.mrb[0].mxu0
        %v560 = vadd.f32 %v305, %v559
        %561 = vdwg.mxu0
        %v562 = vtanh.pop %v511
        %v563 = vtanh.pop %v513
        %v564 = vtanh.pop %v554
        %v565 = vtanh.pop %v556
        %v566 = vtanh.pop %v515
        %v567 = vtanh.pop %v517
        %v568 = vtanh.pop %v558
        %v569 = vtanh.pop %v560
        %v570 = vld [vmem:[%s3] sm:$0xff]
        %v571 = vld [vmem:[%s3 + $0x8] sm:$0xff]
        %v572 = vld [vmem:[%s3 + $0x10] sm:$0xff]
        %v573 = vld [vmem:[%s3 + $0x18] sm:$0xff]
        %v574 = vld [vmem:[%s3 + $0x20] sm:$0xff]
        %v575 = vld [vmem:[%s3 + $0x28] sm:$0xff]
        %v576 = vld [vmem:[%s3 + $0x30] sm:$0xff]
        %v577 = vld [vmem:[%s3 + $0x38] sm:$0xff]
        %v578 = vld [vmem:[%s3 + $0x40] sm:$0xff]
        %v579 = vld [vmem:[%s3 + $0x48] sm:$0xff]
        %v580 = vld [vmem:[%s3 + $0x50] sm:$0xff]
        %v581 = vld [vmem:[%s3 + $0x58] sm:$0xff]
        %v582 = vld [vmem:[%s3 + $0x60] sm:$0xff]
        %v583 = vld [vmem:[%s3 + $0x68] sm:$0xff]
        %v584 = vld [vmem:[%s3 + $0x70] sm:$0xff]
        %v585 = vld [vmem:[%s3 + $0x78] sm:$0xff]
        %v586 = vld [vmem:[%s3 + $0x80] sm:$0xff]
        %v587 = vld [vmem:[%s3 + $0x88] sm:$0xff]
        %v588 = vld [vmem:[%s3 + $0x90] sm:$0xff]
        %v589 = vld [vmem:[%s3 + $0x98] sm:$0xff]
        %v590 = vld [vmem:[%s3 + $0xa0] sm:$0xff]
        %v591 = vld [vmem:[%s3 + $0xa8] sm:$0xff]
        %v592 = vld [vmem:[%s3 + $0xb0] sm:$0xff]
        %v593 = vld [vmem:[%s3 + $0xb8] sm:$0xff]
        %v594 = vld [vmem:[%s3 + $0xc0] sm:$0xff]
        %v595 = vld [vmem:[%s3 + $0xc8] sm:$0xff]
        %v596 = vld [vmem:[%s3 + $0xd0] sm:$0xff]
        %v597 = vld [vmem:[%s3 + $0xd8] sm:$0xff]
        %v598 = vld [vmem:[%s3 + $0xe0] sm:$0xff]
        %v599 = vld [vmem:[%s3 + $0xe8] sm:$0xff]
        %v600 = vld [vmem:[%s3 + $0xf0] sm:$0xff]
        %v601 = vld [vmem:[%s3 + $0xf8] sm:$0xff]
        %v602 = vld [vmem:[%s3 + $0x100] sm:$0xff]
        %v603 = vld [vmem:[%s3 + $0x108] sm:$0xff]
        %v604 = vld [vmem:[%s3 + $0x110] sm:$0xff]
        %v605 = vld [vmem:[%s3 + $0x118] sm:$0xff]
        %v606 = vld [vmem:[%s3 + $0x120] sm:$0xff]
        %v607 = vld [vmem:[%s3 + $0x128] sm:$0xff]
        %v608 = vld [vmem:[%s3 + $0x130] sm:$0xff]
        %v609 = vld [vmem:[%s3 + $0x138] sm:$0xff]
        %v610 = vld [vmem:[%s3 + $0x140] sm:$0xff]
        %v611 = vld [vmem:[%s3 + $0x148] sm:$0xff]
        %v612 = vld [vmem:[%s3 + $0x150] sm:$0xff]
        %v613 = vld [vmem:[%s3 + $0x158] sm:$0xff]
        %v614 = vld [vmem:[%s3 + $0x160] sm:$0xff]
        %v615 = vld [vmem:[%s3 + $0x168] sm:$0xff]
        %v616 = vld [vmem:[%s3 + $0x170] sm:$0xff]
        %v617 = vld [vmem:[%s3 + $0x178] sm:$0xff]
        %v618 = vld [vmem:[%s3 + $0x180] sm:$0xff]
        %v619 = vld [vmem:[%s3 + $0x188] sm:$0xff]
        %v620 = vld [vmem:[%s3 + $0x190] sm:$0xff]
        %v621 = vld [vmem:[%s3 + $0x198] sm:$0xff]
        %v622 = vld [vmem:[%s3 + $0x1a0] sm:$0xff]
        %v623 = vld [vmem:[%s3 + $0x1a8] sm:$0xff]
        %v624 = vld [vmem:[%s3 + $0x1b0] sm:$0xff]
        %v625 = vld [vmem:[%s3 + $0x1b8] sm:$0xff]
        %v626 = vld [vmem:[%s3 + $0x1c0] sm:$0xff]
        %v627 = vld [vmem:[%s3 + $0x1c8] sm:$0xff]
        %v628 = vld [vmem:[%s3 + $0x1d0] sm:$0xff]
        %v629 = vld [vmem:[%s3 + $0x1d8] sm:$0xff]
        %v630 = vld [vmem:[%s3 + $0x1e0] sm:$0xff]
        %v631 = vld [vmem:[%s3 + $0x1e8] sm:$0xff]
        %v632 = vld [vmem:[%s3 + $0x1f0] sm:$0xff]
        %v633 = vld [vmem:[%s3 + $0x1f8] sm:$0xff]
        %v634 = vld [vmem:[%s4] sm:$0x1]
        %v636 = vlaneseq
        %v637 = vshrl.u32 %v636, 7
        %v638 = vsub.s32 0, %v637
        %v639 = vrot.slane %v634, %v638
        %641 = vmatprep.subr.mxu0 0.0
        %642 = vmatpush1.msra.mxu0 %v570
        %643 = vmatprep.subr.mxu0 0.0
        %644 = vmatpush1.msra.mxu0 %v571
        %645 = vmatprep.subr.mxu0 0.0
        %646 = vmatpush1.msra.mxu0 %v572
        %647 = vmatprep.subr.mxu0 0.0
        %648 = vmatpush1.msra.mxu0 %v573
        %649 = vmatprep.subr.mxu0 0.0
        %650 = vmatpush1.msra.mxu0 %v574
        %651 = vmatprep.subr.mxu0 0.0
        %652 = vmatpush1.msra.mxu0 %v575
        %653 = vmatprep.subr.mxu0 0.0
        %654 = vmatpush1.msra.mxu0 %v576
        %655 = vmatprep.subr.mxu0 0.0
        %656 = vmatpush1.msra.mxu0 %v577
        %657 = vmatprep.subr.mxu0 0.0
        %658 = vmatpush1.msra.mxu0 %v578
        %659 = vmatprep.subr.mxu0 0.0
        %660 = vmatpush1.msra.mxu0 %v579
        %661 = vmatprep.subr.mxu0 0.0
        %662 = vmatpush1.msra.mxu0 %v580
        %663 = vmatprep.subr.mxu0 0.0
        %664 = vmatpush1.msra.mxu0 %v581
        %665 = vmatprep.subr.mxu0 0.0
        %666 = vmatpush1.msra.mxu0 %v582
        %667 = vmatprep.subr.mxu0 0.0
        %668 = vmatpush1.msra.mxu0 %v583
        %669 = vmatprep.subr.mxu0 0.0
        %670 = vmatpush1.msra.mxu0 %v584
        %671 = vmatprep.subr.mxu0 0.0
        %672 = vmatpush1.msra.mxu0 %v585
        %673 = vmatprep.subr.mxu0 0.0
        %674 = vmatpush1.msra.mxu0 %v586
        %675 = vmatprep.subr.mxu0 0.0
        %676 = vmatpush1.msra.mxu0 %v587
        %677 = vmatprep.subr.mxu0 0.0
        %678 = vmatpush1.msra.mxu0 %v588
        %679 = vmatprep.subr.mxu0 0.0
        %680 = vmatpush1.msra.mxu0 %v589
        %681 = vmatprep.subr.mxu0 0.0
        %682 = vmatpush1.msra.mxu0 %v590
        %683 = vmatprep.subr.mxu0 0.0
        %684 = vmatpush1.msra.mxu0 %v591
        %685 = vmatprep.subr.mxu0 0.0
        %686 = vmatpush1.msra.mxu0 %v592
        %687 = vmatprep.subr.mxu0 0.0
        %688 = vmatpush1.msra.mxu0 %v593
        %689 = vmatprep.subr.mxu0 0.0
        %690 = vmatpush1.msra.mxu0 %v594
        %691 = vmatprep.subr.mxu0 0.0
        %692 = vmatpush1.msra.mxu0 %v595
        %693 = vmatprep.subr.mxu0 0.0
        %694 = vmatpush1.msra.mxu0 %v596
        %695 = vmatprep.subr.mxu0 0.0
        %696 = vmatpush1.msra.mxu0 %v597
        %697 = vmatprep.subr.mxu0 0.0
        %698 = vmatpush1.msra.mxu0 %v598
        %699 = vmatprep.subr.mxu0 0.0
        %700 = vmatpush1.msra.mxu0 %v599
        %701 = vmatprep.subr.mxu0 0.0
        %702 = vmatpush1.msra.mxu0 %v600
        %703 = vmatprep.subr.mxu0 0.0
        %704 = vmatpush1.msra.mxu0 %v601
        %705 = vmatprep.mubr.f32.mxu0 %v563
        %706 = vmatmul.mubr.f32.gmra.mrb[0].mxu0 %v562
        %v707 = vpop.f32.mrb[0].mxu0
        %v708 = vadd.f32 %v639, %v707
        %v709 = vpop.f32.mrb[0].mxu0
        %710 = vmatprep.mubr.f32.mxu0 %v567
        %711 = vmatmul.mubr.f32.gmra.mrb[0].mxu0 %v566
        %v712 = vpop.f32.mrb[0].mxu0
        %v713 = vadd.f32 %v639, %v712
        %v714 = vpop.f32.mrb[0].mxu0
        %715 = vdwg.mxu0
        %716 = vmatprep.subr.mxu0 0.0
        %717 = vmatpush1.msra.mxu0 %v602
        %718 = vmatprep.subr.mxu0 0.0
        %719 = vmatpush1.msra.mxu0 %v603
        %720 = vmatprep.subr.mxu0 0.0
        %721 = vmatpush1.msra.mxu0 %v604
        %722 = vmatprep.subr.mxu0 0.0
        %723 = vmatpush1.msra.mxu0 %v605
        %724 = vmatprep.subr.mxu0 0.0
        %725 = vmatpush1.msra.mxu0 %v606
        %726 = vmatprep.subr.mxu0 0.0
        %727 = vmatpush1.msra.mxu0 %v607
        %728 = vmatprep.subr.mxu0 0.0
        %729 = vmatpush1.msra.mxu0 %v608
        %730 = vmatprep.subr.mxu0 0.0
        %731 = vmatpush1.msra.mxu0 %v609
        %732 = vmatprep.subr.mxu0 0.0
        %733 = vmatpush1.msra.mxu0 %v610
        %734 = vmatprep.subr.mxu0 0.0
        %735 = vmatpush1.msra.mxu0 %v611
        %736 = vmatprep.subr.mxu0 0.0
        %737 = vmatpush1.msra.mxu0 %v612
        %738 = vmatprep.subr.mxu0 0.0
        %739 = vmatpush1.msra.mxu0 %v613
        %740 = vmatprep.subr.mxu0 0.0
        %741 = vmatpush1.msra.mxu0 %v614
        %742 = vmatprep.subr.mxu0 0.0
        %743 = vmatpush1.msra.mxu0 %v615
        %744 = vmatprep.subr.mxu0 0.0
        %745 = vmatpush1.msra.mxu0 %v616
        %746 = vmatprep.subr.mxu0 0.0
        %747 = vmatpush1.msra.mxu0 %v617
        %748 = vmatprep.subr.mxu0 0.0
        %749 = vmatpush1.msra.mxu0 %v618
        %750 = vmatprep.subr.mxu0 0.0
        %751 = vmatpush1.msra.mxu0 %v619
        %752 = vmatprep.subr.mxu0 0.0
        %753 = vmatpush1.msra.mxu0 %v620
        %754 = vmatprep.subr.mxu0 0.0
        %755 = vmatpush1.msra.mxu0 %v621
        %756 = vmatprep.subr.mxu0 0.0
        %757 = vmatpush1.msra.mxu0 %v622
        %758 = vmatprep.subr.mxu0 0.0
        %759 = vmatpush1.msra.mxu0 %v623
        %760 = vmatprep.subr.mxu0 0.0
        %761 = vmatpush1.msra.mxu0 %v624
        %762 = vmatprep.subr.mxu0 0.0
        %763 = vmatpush1.msra.mxu0 %v625
        %764 = vmatprep.subr.mxu0 0.0
        %765 = vmatpush1.msra.mxu0 %v626
        %766 = vmatprep.subr.mxu0 0.0
        %767 = vmatpush1.msra.mxu0 %v627
        %768 = vmatprep.subr.mxu0 0.0
        %769 = vmatpush1.msra.mxu0 %v628
        %770 = vmatprep.subr.mxu0 0.0
        %771 = vmatpush1.msra.mxu0 %v629
        %772 = vmatprep.subr.mxu0 0.0
        %773 = vmatpush1.msra.mxu0 %v630
        %774 = vmatprep.subr.mxu0 0.0
        %775 = vmatpush1.msra.mxu0 %v631
        %776 = vmatprep.subr.mxu0 0.0
        %777 = vmatpush1.msra.mxu0 %v632
        %778 = vmatprep.subr.mxu0 0.0
        %779 = vmatpush1.msra.mxu0 %v633
        %780 = vmatprep.mubr.f32.mxu0 %v565
        %781 = vmatmul.mubr.f32.gmra.mrb[0].mxu0 %v564
        %v782 = vpop.f32.mrb[0].mxu0
        %v783 = vadd.f32 %v708, %v782
        %v784 = vpop.f32.mrb[0].mxu0
        %785 = vmatprep.mubr.f32.mxu0 %v569
        %786 = vmatmul.mubr.f32.gmra.mrb[0].mxu0 %v568
        %v787 = vpop.f32.mrb[0].mxu0
        %v788 = vadd.f32 %v713, %v787
        %v789 = vpop.f32.mrb[0].mxu0
        %790 = vdwg.mxu0
        %vm791 = vcmask 523264
        %v792 = vsel %vm791, %v783, -inf
        %793 = vmax.xlane.f32.xlu0 %v792
        %v794 = vpop.xlane.xlu0 %793
        %v795 = vsel %vm791, %v788, -inf
        %796 = vmax.xlane.f32.xlu0 %v795
        %v797 = vpop.xlane.xlu0 %796
        %v798 = vsub.f32 %v783, %v794
        %v799 = vsub.f32 %v788, %v797
        %v800 = vmul.f32 %v798, 1.442695
        %v801 = vpow.pop %v800
        %v802 = vmul.f32 %v799, 1.442695
        %v803 = vpow.pop %v802
        %v804 = vld [vmem:[%s5] sm:$0xff]
        %v805 = vld [vmem:[%s5 + $0x8] sm:$0xff]
        %v806 = vld [vmem:[%s5 + $0x10] sm:$0xff]
        %v807 = vld [vmem:[%s5 + $0x18] sm:$0xff]
        %v808 = vld [vmem:[%s5 + $0x20] sm:$0xff]
        %v809 = vld [vmem:[%s5 + $0x28] sm:$0xff]
        %v810 = vld [vmem:[%s5 + $0x30] sm:$0xff]
        %v811 = vld [vmem:[%s5 + $0x38] sm:$0xff]
        %v813 = vsel %vm791, %v801, 0
        %v816 = vsel %vm791, %v803, 0
        %818 = vmatprep.subr.mxu0 0.0
        %819 = vmatpush1.msra.mxu0 %v804
        %820 = vmatprep.subr.mxu0 0.0
        %821 = vmatpush1.msra.mxu0 %v805
        %822 = vmatprep.subr.mxu0 0.0
        %823 = vmatpush1.msra.mxu0 %v806
        %824 = vmatprep.subr.mxu0 0.0
        %825 = vmatpush1.msra.mxu0 %v807
        %826 = vmatprep.subr.mxu0 0.0
        %827 = vmatpush1.msra.mxu0 %v808
        %828 = vmatprep.subr.mxu0 0.0
        %829 = vmatpush1.msra.mxu0 %v809
        %830 = vmatprep.subr.mxu0 0.0
        %831 = vmatpush1.msra.mxu0 %v810
        %832 = vmatprep.subr.mxu0 0.0
        %833 = vmatpush1.msra.mxu0 %v811
        %834 = vmatprep.subr.mxu0 0.0
        %835 = vmatpush1.msra.mxu0 0.0
        %836 = vmatprep.subr.mxu0 0.0
        %837 = vmatpush1.msra.mxu0 0.0
        %838 = vmatprep.subr.mxu0 0.0
        %839 = vmatpush1.msra.mxu0 0.0
        %840 = vmatprep.subr.mxu0 0.0
        %841 = vmatpush1.msra.mxu0 0.0
        %842 = vmatprep.subr.mxu0 0.0
        %843 = vmatpush1.msra.mxu0 0.0
        %844 = vmatprep.subr.mxu0 0.0
        %845 = vmatpush1.msra.mxu0 0.0
        %846 = vmatprep.subr.mxu0 0.0
        %847 = vmatpush1.msra.mxu0 0.0
        %848 = vmatprep.subr.mxu0 0.0
        %849 = vmatpush1.msra.mxu0 0.0
        %850 = vmatprep.subr.mxu0 0.0
        %851 = vmatpush1.msra.mxu0 0.0
        %852 = vmatprep.subr.mxu0 0.0
        %853 = vmatpush1.msra.mxu0 0.0
        %854 = vmatprep.subr.mxu0 0.0
        %855 = vmatpush1.msra.mxu0 0.0
        %856 = vmatprep.subr.mxu0 0.0
        %857 = vmatpush1.msra.mxu0 0.0
        %858 = vmatprep.subr.mxu0 0.0
        %859 = vmatpush1.msra.mxu0 0.0
        %860 = vmatprep.subr.mxu0 0.0
        %861 = vmatpush1.msra.mxu0 0.0
        %862 = vmatprep.subr.mxu0 0.0
        %863 = vmatpush1.msra.mxu0 0.0
        %864 = vmatprep.subr.mxu0 0.0
        %865 = vmatpush1.msra.mxu0 0.0
        %866 = vmatprep.subr.mxu0 0.0
        %867 = vmatpush1.msra.mxu0 0.0
        %868 = vmatprep.subr.mxu0 0.0
        %869 = vmatpush1.msra.mxu0 0.0
        %870 = vmatprep.subr.mxu0 0.0
        %871 = vmatpush1.msra.mxu0 0.0
        %872 = vmatprep.subr.mxu0 0.0
        %873 = vmatpush1.msra.mxu0 0.0
        %874 = vmatprep.subr.mxu0 0.0
        %875 = vmatpush1.msra.mxu0 0.0
        %876 = vmatprep.subr.mxu0 0.0
        %877 = vmatpush1.msra.mxu0 0.0
        %878 = vmatprep.subr.mxu0 0.0
        %879 = vmatpush1.msra.mxu0 0.0
        %880 = vmatprep.subr.mxu0 0.0
        %881 = vmatpush1.msra.mxu0 0.0
        %882 = vmatprep.mubr.f32.mxu0 0.0
        %883 = vmatmul.mubr.f32.gmra.mrb[0].mxu0 %v813
        %v884 = vpop.f32.mrb[0].mxu0
        %v885 = vadd.f32 0.0, %v884
        %v886 = vpop.f32.mrb[0].mxu0
        %887 = vmatprep.mubr.f32.mxu0 0.0
        %888 = vmatmul.mubr.f32.gmra.mrb[0].mxu0 %v816
        %v889 = vpop.f32.mrb[0].mxu0
        %v890 = vadd.f32 0.0, %v889
        %v891 = vpop.f32.mrb[0].mxu0
        %892 = vdwg.mxu0
        %v893 = vrcp.pop %v885
        %v894 = vrcp.pop %v890
        %v895 = vmul.f32 %v801, %v893
        %v896 = vmul.f32 %v803, %v894
        %897 = vst.msk [vmem:[%s245] sm:$0xff] %vm791, %v895
        %898 = vst.msk [vmem:[%s245 + $0x8] sm:$0xff] %vm791, %v896
        %s899 = sand.u32 %s159, 1
        %s900 = scalar_lea.sflag [#allocation3], %s899
        %s901 = sand.u32 %s159, 1
        %s902 = smul.addr %s901, 16
        %s903 = scalar_lea.vmem [#allocation2], %s902
        // Predicated region
        $region45: #{tpu_custom_call.1} parent=43 // pred_check
          %p904 = pneg %p169
        $region46: #{tpu_custom_call.1} parent=43 // pred_check_branch
          %906 = sbr.rel (%p904) target = $region48
        $region47: #{tpu_custom_call.1} parent=43 // pred_region
          %s907 = smul.u32 2, %s20
          %s909 = ssub.s32 256, 256
          %910 = vsyncadd %s900, %s909
          %s911 = smul.addr %s907, 128
          %s912 = scalar_lea.hbm %s6, %s911
          %s913 = sshll.u32 %s903, 4
          %s914 = int_to_ptr.vmem [resolvable:$true] %s913
          %919 = dma.vmem_to_hbm [thread:$0]  %s914, 256, %s912, %s900, 128, 128, 8
        $region48: #{tpu_custom_call.1} parent=43 // pred_fallthru
          _
      $region44: #{tpu_custom_call.1} parent=5 // pred_fallthru
        _
      %p920 = scmp.le.s32.totalorder 2, %s15
      // Predicated region
      $region49: #{tpu_custom_call.1} parent=5 // pred_check
        %p921 = pneg %p920
      $region50: #{tpu_custom_call.1} parent=5 // pred_check_branch
        %923 = sbr.rel (%p921) target = $region52
      $region51: #{tpu_custom_call.1} parent=5 // pred_region
        %s924 = ssub.s32 %s15, 2
        // Predicated region
        $region53: #{tpu_custom_call.1} parent=51 // pred_check
          %p925 = pneg %p175
        $region54: #{tpu_custom_call.1} parent=51 // pred_check_branch
          %927 = sbr.rel (%p925) target = $region56
        $region55: #{tpu_custom_call.1} parent=51 // pred_region
          %s928 = sand.u32 %s160, 1
          %s929 = scalar_lea.sflag [#allocation3], %s928
          %s930 = sand.u32 %s160, 1
          %s931 = smul.addr %s930, 16
          %s932 = scalar_lea.vmem [#allocation2], %s931
          %933 = dma.done %s929, 256
        $region56: #{tpu_custom_call.1} parent=51 // pred_fallthru
          _
      $region52: #{tpu_custom_call.1} parent=5 // pred_fallthru
        _
    $region6: #{tpu_custom_call.1} parent=1 // loop_footer
      %s19 = sadd.s32 1, %s15
    $region7: #{tpu_custom_call.1} parent=1 // loop_footer_branch
      %14 = sbr.rel target = $region3
    $region8: #{tpu_custom_call.1} parent=1 // loop_exit
      _
    %934 = vsyncpa [#allocation3], 1
    %s935 = scalar_lea.sflag [#allocation3], 1
    %936 = vsyncpa %s935, 1

</llo_original>
